<compile_context>
chip_gen: v7x
topology: tpu7x:2x2x1
jax: 0.10.0
libtpu: 0.0.40
codegen_flags: <defaults>
</compile_context>

<pallas_src>
import functools
import math

import jax
import jax.numpy as jnp
import numpy as np
from jax.experimental import pallas as pl
from jax.experimental.pallas import tpu as pltpu

# Per-input-block byte cap.  Double-buffered x + out = 4x this (+ a tiny pe
# tile), which fits the 16 MiB v5e scoped-VMEM default and leaves headroom on
# v6e/v7x (32 MiB scoped default) without any compiler flag.
_MAX_BLOCK_BYTES = 3 * 1024 * 1024
# Below this total size a fused XLA elementwise op is faster than pallas_call.
_SMALL_INPUT_BYTES = 1 << 20


def build_pe_table(d_model: int, max_seq_len: int = 78) -> jnp.ndarray:
    """Deterministic positional-encoding table, identical to the torch loop
    (note: the reference module uses base 1000, not 10000)."""
    pe = np.zeros((max_seq_len, d_model), dtype=np.float32)
    for pos in range(max_seq_len):
        for i in range(0, d_model, 2):
            pe[pos, i] = math.sin(pos / 1000 ** (i / d_model))
            pe[pos, i + 1] = math.cos(pos / 1000 ** (i / d_model))
    return jnp.asarray(pe)


def _pe_add_kernel(x_ref, pe_ref, o_ref, *, scale: float):
    # x_ref:  (block_b, block_l) tile of the flattened (B, S*D) input
    # pe_ref: (1, block_l)       tile of the flattened positional encodings
    # Broadcast over the sublane (batch) axis happens in the VPU; no reshape.
    o_ref[...] = x_ref[...] * scale + pe_ref[...]


def _round_up(n: int, m: int) -> int:
    return -(-n // m) * m


def _largest_divisor_multiple(total: int, quantum: int, cap: int) -> int:
    """Largest multiple of `quantum` that divides `total` and is <= cap.
    Assumes total % quantum == 0 (so `quantum` itself is always a fallback)."""
    cap = min(cap, total)
    cand = cap - cap % quantum
    while cand >= quantum:
        if total % cand == 0:
            return cand
        cand -= quantum
    return quantum


def _choose_tiling(B: int, L: int, itemsize: int):
    """Pick padded extents and block shape for the flattened (B, L) view.

    Returns (B_pad, L_pad, block_b, block_l) with exact divisibility
    guaranteed:  B_pad % block_b == 0,  L_pad % block_l == 0,  and
    block_b * block_l * itemsize <= _MAX_BLOCK_BYTES.
    """
    budget = _MAX_BLOCK_BYTES
    # Native sublane pack per dtype: f32 -> 8, bf16 -> 16, int8/fp8 -> 32.
    sub = max(8, 32 // itemsize)
    L_pad = _round_up(L, 128)

    if B % sub == 0:
        B_pad, b_quantum = B, sub
    elif B * 128 * itemsize <= budget:
        # Small batch: a full-extent batch block is always layout-legal and
        # avoids wasting bandwidth on pad rows.
        B_pad, b_quantum = B, B
    else:
        # Large, awkward batch: pad to the sublane pack (<= sub-1 extra rows).
        B_pad, b_quantum = _round_up(B, sub), sub

    # Preferred lane tile: 1-2K lanes (lane-dense, unmasked stores).
    block_l = _largest_divisor_multiple(L_pad, 128, 2048)
    # Batch tile: as many rows as the budget allows (grow batch before lanes,
    # so the per-lane-tile pe fetch is amortized over many rows).
    max_rows = max(b_quantum, budget // (block_l * itemsize))
    block_b = _largest_divisor_multiple(B_pad, b_quantum, max_rows)
    if block_b == B_pad:
        # Whole (padded) batch fits in one tile: spend the remaining budget on
        # the lane axis instead (also shrinks block_l when a full-extent batch
        # block would otherwise exceed the budget).
        max_lanes = max(128, budget // (B_pad * itemsize))
        block_l = _largest_divisor_multiple(L_pad, 128, max_lanes)
    return B_pad, L_pad, block_b, block_l


def rtids_positional_encoder(
    x: jnp.ndarray, pe_table: jnp.ndarray, *, force_pallas: bool = False
) -> jnp.ndarray:
    """x: (B, S, D).  Returns x * sqrt(D) + pe[:S] (broadcast over batch)."""
    B, S, D = x.shape
    scale = float(math.sqrt(D))
    dtype = x.dtype
    itemsize = jnp.dtype(dtype).itemsize
    L = S * D
    total_bytes = B * L * itemsize

    if total_bytes < _SMALL_INPUT_BYTES and not force_pallas:
        # Tiny inputs are dominated by pallas_call launch + per-step overhead;
        # a single fused XLA elementwise op is strictly faster.
        return x * scale + pe_table[:S][None, :, :].astype(dtype)

    # Glue (outside the hot path): flatten to a lane-dense 2-D view.
    x2 = x.reshape(B, L)
    pe2 = pe_table[:S, :].reshape(1, L).astype(dtype)

    if total_bytes <= _MAX_BLOCK_BYTES:
        # One full block; block shape == full array dims satisfies (8,128).
        B_pad, L_pad = B, L
        block_b, block_l = B, L
    else:
        B_pad, L_pad, block_b, block_l = _choose_tiling(B, L, itemsize)
        if L_pad != L or B_pad != B:
            x2 = jnp.pad(x2, ((0, B_pad - B), (0, L_pad - L)))
            pe2 = jnp.pad(pe2, ((0, 0), (0, L_pad - L)))

    # Lane axis OUTER, batch axis INNER: pe's block index is constant across
    # the inner batch sweep, so Pallas skips its re-DMA on those steps.
    grid = (L_pad // block_l, B_pad // block_b)

    kernel = functools.partial(_pe_add_kernel, scale=scale)

    out2 = pl.pallas_call(
        kernel,
        out_shape=jax.ShapeDtypeStruct((B_pad, L_pad), dtype),
        grid=grid,
        in_specs=[
            pl.BlockSpec((block_b, block_l), lambda li, bi: (bi, li)),
            pl.BlockSpec((1, block_l), lambda li, bi: (0, li)),
        ],
        out_specs=pl.BlockSpec((block_b, block_l), lambda li, bi: (bi, li)),
        compiler_params=pltpu.CompilerParams(
            dimension_semantics=("parallel", "parallel")
        ),
    )(x2, pe2)

    if (B_pad, L_pad) != (B, L):
        out2 = out2[:B, :L]
    return out2.reshape(B, S, D)


if __name__ == "__main__":
    B, S, D = 2, 8, 32
    MAX_SEQ_LEN = 78

    key = jax.random.PRNGKey(0)
    x = jax.random.normal(key, (B, S, D), dtype=jnp.float32)

    pe_table = build_pe_table(D, MAX_SEQ_LEN)

    # force_pallas=True so the demo exercises the kernel even at this tiny
    # shape (production calls would take the fused-XLA fast path).
    out = rtids_positional_encoder(x, pe_table, force_pallas=True)
    out = jax.block_until_ready(out)

    # Reference check (pure JAX) for sanity.
    ref = x * math.sqrt(D) + pe_table[:S][None, :, :]
    np.testing.assert_allclose(np.asarray(out), np.asarray(ref), rtol=1e-6, atol=1e-6)

    print("KERNEL_OK")
</pallas_src>

<mosaic_0001>
module attributes {stable_mosaic.version = 11 : i64} {
  func.func @_pe_add_kernel(%arg0: i32, %arg1: i32, %arg2: memref<2x256xf32, #tpu.memory_space<vmem>>, %arg3: memref<1x256xf32, #tpu.memory_space<vmem>>, %arg4: memref<2x256xf32, #tpu.memory_space<vmem>>) attributes {dimension_semantics = [#tpu.dimension_semantics<parallel>, #tpu.dimension_semantics<parallel>], iteration_bounds = array<i64: 1, 1>, scalar_prefetch = 0 : i64, scratch_operands = 0 : i64, tpu.core_type = #tpu.core_type<tc>, window_params = [{transform_indices = @transform_0, window_bounds = array<i64: 2, 256>}, {transform_indices = @transform_1, window_bounds = array<i64: 1, 256>}, {transform_indices = @transform_2, window_bounds = array<i64: 2, 256>}]} {
    %c0 = arith.constant 0 : index
    %c0_0 = arith.constant 0 : index
    %0 = vector.load %arg2[%c0, %c0_0] : memref<2x256xf32, #tpu.memory_space<vmem>>, vector<2x256xf32>
    %cst = arith.constant 5.65685415 : f32
    %1 = vector.broadcast %cst : f32 to vector<2x256xf32>
    %2 = arith.mulf %0, %1 : vector<2x256xf32>
    %c0_1 = arith.constant 0 : index
    %c0_2 = arith.constant 0 : index
    %3 = vector.load %arg3[%c0_1, %c0_2] : memref<1x256xf32, #tpu.memory_space<vmem>>, vector<1x256xf32>
    %4 = vector.broadcast %3 : vector<1x256xf32> to vector<2x256xf32>
    %5 = arith.addf %2, %4 : vector<2x256xf32>
    %c0_3 = arith.constant 0 : index
    %c0_4 = arith.constant 0 : index
    %6 = vector.load %arg4[%c0_3, %c0_4] : memref<2x256xf32, #tpu.memory_space<vmem>>, vector<2x256xf32>
    tpu.vector_store %arg4[%c0_3, %c0_4], %5 {strides = array<i32>} : memref<2x256xf32, #tpu.memory_space<vmem>>, vector<2x256xf32>,
    return
  }
  func.func @transform_0(%arg0: i32, %arg1: i32) -> (i32, i32) {
    %c0_i32 = arith.constant 0 : i32
    return %arg1, %arg0 : i32, i32
  }
  func.func @transform_1(%arg0: i32, %arg1: i32) -> (i32, i32) {
    %c0_i32 = arith.constant 0 : i32
    %c0_i32_0 = arith.constant 0 : i32
    return %c0_i32, %arg0 : i32, i32
  }
  func.func @transform_2(%arg0: i32, %arg1: i32) -> (i32, i32) {
    %c0_i32 = arith.constant 0 : i32
    return %arg1, %arg0 : i32, i32
  }
}

</mosaic_0001>

<llo_original>
// kernel: tpu_custom_call.1
$region0: #{tpu_custom_call.1}
  #allocation0 [shape = 'u32[]', space=smem, size = 0x4, offset = 0x4, fixed_abs, tag = 'smem constant byte address 0x4 - core index']
  #allocation1 [shape = 'u32[144,128]{1,0:T(1,128)}', space=vmem, size = 0x12000, scoped, tag = 'internal scratch']
  %s0 = inlined_call_operand.hbm [shape: f32[2,256], index: 0, kind: input, shape index: {}]
  %s1 = inlined_call_operand.vmem [shape: f32[1,256], index: 1, kind: input, shape index: {}]
  %s2 = inlined_call_operand.hbm [shape: f32[2,256], index: 2, kind: output, shape index: {}]
  %s3 = sld [smem:[#allocation0]]
  $region22: #{tpu_custom_call.1} parent=0
    _
  %s5 = ssub.s32 1, %s3
  %s6 = scalar_select 0, %s5, %s3
  $region1: #{tpu_custom_call.1} parent=0
    #allocation2 [shape = 'u8[2048]{0}', space=vmem, size = 0x800, scoped, tag = 'input window, operand 0, single buffered']
    #allocation3 [shape = 's32[1]{0}', space=sflag, size = 0x4, scoped, tag = 'scoped memory for tpu_custom_call.1']
    #allocation4 [shape = 's32[1]{0}', space=sflag, size = 0x4, scoped, tag = 'scoped memory for tpu_custom_call.1']
    #allocation5 [shape = 'u8[2048]{0}', space=vmem, size = 0x800, scoped, tag = 'output window, operand 0, single buffered']
    %7 = vsyncpa [#allocation3], 0
    %8 = vsyncpa [#allocation4], 0
    // Predicated region
    $region2: #{tpu_custom_call.1} parent=1 // pred_check
      _
    $region3: #{tpu_custom_call.1} parent=1 // pred_check_branch
      %10 = sbr.rel (0) target = $region5
    $region4: #{tpu_custom_call.1} parent=1 // pred_region
      %s12 = ssub.s32 64, 64
      %13 = vsyncadd [#allocation3], %s12
      %s15 = sshll.u32 [#allocation2], 4
      %s16 = int_to_ptr.vmem [resolvable:$true] %s15
      %18 = dma.hbm_to_vmem [thread:$0]  %s0, 64, %s16, [#allocation3]
    $region5: #{tpu_custom_call.1} parent=1 // pred_fallthru
      _
    // Predicated region
    $region6: #{tpu_custom_call.1} parent=1 // pred_check
      _
    $region7: #{tpu_custom_call.1} parent=1 // pred_check_branch
      %20 = sbr.rel (0) target = $region9
    $region8: #{tpu_custom_call.1} parent=1 // pred_region
      _
    $region9: #{tpu_custom_call.1} parent=1 // pred_fallthru
      _
    // Predicated region
    $region10: #{tpu_custom_call.1} parent=1 // pred_check
      _
    $region11: #{tpu_custom_call.1} parent=1 // pred_check_branch
      %22 = sbr.rel (0) target = $region13
    $region12: #{tpu_custom_call.1} parent=1 // pred_region
      %23 = dma.done [#allocation3], 64
    $region13: #{tpu_custom_call.1} parent=1 // pred_fallthru
      _
    %v24 = vld [vmem:[#allocation2] sm:$0xf]
    %v25 = vmul.f32 %v24, 5.656854
    %v26 = vld [vmem:[%s1] sm:$0x3]
    %v28 = vlaneseq
    %v29 = vshrl.u32 %v28, 7
    %v30 = vsub.s32 0, %v29
    %v31 = vrot.slane %v26, %v30
    %v32 = vlaneseq
    %v33 = vshrl.u32 %v32, 7
    %v34 = vsub.s32 1, %v33
    %v35 = vrot.slane %v26, %v34
    %v36 = vcombine.low %v31, %v35
    %v38 = vunpack.c.l.s4 1983009808
    %v39 = vunpack.c.0.s8 %v38
    %v40 = vlaneseq
    %v41 = vshrl.u32 %v40, 7
    %v42 = vsub.s32 %v39, %v41
    %v43 = vrot.slane %v36, %v42
    %v45 = vadd.f32 %v25, %v43
    %46 = vst [vmem:[#allocation5] sm:$0xf] %v45
    // Predicated region
    $region14: #{tpu_custom_call.1} parent=1 // pred_check
      _
    $region15: #{tpu_custom_call.1} parent=1 // pred_check_branch
      %48 = sbr.rel (0) target = $region17
    $region16: #{tpu_custom_call.1} parent=1 // pred_region
      %s50 = ssub.s32 64, 64
      %51 = vsyncadd [#allocation4], %s50
      %s53 = sshll.u32 [#allocation5], 4
      %s54 = int_to_ptr.vmem [resolvable:$true] %s53
      %56 = dma.vmem_to_hbm [thread:$0]  %s54, 64, %s2, [#allocation4]
    $region17: #{tpu_custom_call.1} parent=1 // pred_fallthru
      _
    // Predicated region
    $region18: #{tpu_custom_call.1} parent=1 // pred_check
      _
    $region19: #{tpu_custom_call.1} parent=1 // pred_check_branch
      %58 = sbr.rel (0) target = $region21
    $region20: #{tpu_custom_call.1} parent=1 // pred_region
      %59 = dma.done [#allocation4], 64
    $region21: #{tpu_custom_call.1} parent=1 // pred_fallthru
      _
    %60 = vsyncpa [#allocation3], 1
    %61 = vsyncpa [#allocation4], 1

</llo_original>
